<compile_context>
chip_gen: v7x
topology: tpu7x:2x2x1
jax: 0.10.0
libtpu: 0.0.40
codegen_flags: <defaults>
</compile_context>

<pallas_src>
import functools

import jax
import jax.numpy as jnp
from jax import lax
from jax.experimental import pallas as pl
from jax.experimental.pallas import tpu as pltpu

LANES = 128
SUBLANES = 8


def _round_up(x, n):
    return ((x + n - 1) // n) * n


def _precision_kernel(x_ref, t_ref, tp_ref, sx_ref, *,
                      m_rows, tm, steps_per_core, needs_mask):
    c = pl.program_id(0)   # core / partial-output index (parallel)
    i = pl.program_id(1)   # reduction step (arbitrary / sequential)

    @pl.when(i == 0)
    def _():
        tp_ref[...] = jnp.zeros_like(tp_ref)
        sx_ref[...] = jnp.zeros_like(sx_ref)

    x = x_ref[...].astype(jnp.float32)
    t = t_ref[...].astype(jnp.float32)
    xt = x * t

    if needs_mask:
        # Mask rows past the logical end of the data (covers both the partial
        # last block and the clamped "overflow" blocks of the core split).
        row0 = (c * steps_per_core + i) * tm
        rows = lax.broadcasted_iota(jnp.int32, (tm, LANES), 0) + row0
        valid = rows < m_rows
        xt = jnp.where(valid, xt, 0.0)
        x = jnp.where(valid, x, 0.0)

    # Fold (tm, 128) -> (8, 128): sublane-aligned reshape + VPU adds only.
    tp_ref[...] += xt.reshape(tm // SUBLANES, SUBLANES, LANES).sum(axis=0)
    sx_ref[...] += x.reshape(tm // SUBLANES, SUBLANES, LANES).sum(axis=0)


def precision(inputs, targets, *, tm=2048, ncores=2):
    """Pallas equivalent of Precision.forward: TP / (TP + FP)."""
    x = inputs.reshape(-1)
    t = targets.reshape(-1)
    n = x.shape[0]

    # Pad only up to a (8*128)-element boundary (<= 1023 elems, ~4 KiB), so
    # the data can be viewed as (m, 128) with m a multiple of 8. Zero padding
    # is harmless: every accumulated term is multiplied by x.
    pad = (-n) % (SUBLANES * LANES)
    if pad:
        x = jnp.pad(x, (0, pad))
        t = jnp.pad(t, (0, pad))
    m = x.shape[0] // LANES
    x2 = x.reshape(m, LANES)
    t2 = t.reshape(m, LANES)

    # Tile rows: multiple of 8, never larger than the data.
    tm_eff = min(_round_up(tm, SUBLANES), m)
    nblocks = pl.cdiv(m, tm_eff)
    ncores_eff = ncores if nblocks >= ncores else 1
    steps_per_core = pl.cdiv(nblocks, ncores_eff)
    needs_mask = (ncores_eff * steps_per_core * tm_eff) != m
    last_blk = nblocks - 1

    def in_map(c, i):
        blk = c * steps_per_core + i
        # Clamp overflow blocks of the core split to a real block; their
        # contribution is masked out inside the kernel.
        return (jnp.minimum(blk, last_blk), 0)

    kernel = functools.partial(
        _precision_kernel,
        m_rows=m, tm=tm_eff, steps_per_core=steps_per_core,
        needs_mask=needs_mask)

    tp_part, sx_part = pl.pallas_call(
        kernel,
        out_shape=(
            jax.ShapeDtypeStruct((ncores_eff, SUBLANES, LANES), jnp.float32),
            jax.ShapeDtypeStruct((ncores_eff, SUBLANES, LANES), jnp.float32),
        ),
        grid_spec=pltpu.PrefetchScalarGridSpec(
            num_scalar_prefetch=0,
            grid=(ncores_eff, steps_per_core),
            in_specs=[
                pl.BlockSpec((tm_eff, LANES), in_map),
                pl.BlockSpec((tm_eff, LANES), in_map),
            ],
            out_specs=(
                pl.BlockSpec((None, SUBLANES, LANES), lambda c, i: (c, 0, 0)),
                pl.BlockSpec((None, SUBLANES, LANES), lambda c, i: (c, 0, 0)),
            ),
        ),
        compiler_params=pltpu.CompilerParams(
            dimension_semantics=("parallel", "arbitrary"),
        ),
    )(x2, t2)

    tp = jnp.sum(tp_part)
    sum_x = jnp.sum(sx_part)
    # FP = sum(x) - TP  =>  TP / (TP + FP) == TP / sum(x).
    return tp / sum_x


def _ref_precision(x, t):
    x = x.astype(jnp.float32)
    t = t.astype(jnp.float32)
    tp = jnp.sum(x * t)
    fp = jnp.sum(x * (1.0 - t))
    return tp / (tp + fp)


if __name__ == "__main__":
    key = jax.random.PRNGKey(0)
    k1, k2, k3, k4, k5, k6 = jax.random.split(key, 6)

    # NCHW inputs consistent with a segmentation-style metric.
    inputs = jax.random.uniform(k1, (2, 4, 16, 16), dtype=jnp.float32)
    targets = (jax.random.uniform(k2, (2, 4, 16, 16)) > 0.5).astype(jnp.float32)

    result = precision(inputs, targets)
    jax.block_until_ready(result)
    assert jnp.allclose(result, _ref_precision(inputs, targets),
                        rtol=1e-5, atol=1e-6), (result,)

    # Multi-block / two-partial-output (core-split) path with block clamping.
    x2 = jax.random.uniform(k3, (2, 4, 17, 16), dtype=jnp.float32)
    t2 = (jax.random.uniform(k4, (2, 4, 17, 16)) > 0.5).astype(jnp.float32)
    r2 = precision(x2, t2, tm=8)
    jax.block_until_ready(r2)
    assert jnp.allclose(r2, _ref_precision(x2, t2), rtol=1e-5, atol=1e-6), (r2,)

    # Partial last block (garbage rows masked in-kernel).
    r3 = precision(x2, t2, tm=16)
    jax.block_until_ready(r3)
    assert jnp.allclose(r3, _ref_precision(x2, t2), rtol=1e-5, atol=1e-6), (r3,)

    # Element count not a multiple of 128 (small lane/row padding path).
    x4 = jax.random.uniform(k5, (2, 3, 7, 5), dtype=jnp.float32)
    t4 = (jax.random.uniform(k6, (2, 3, 7, 5)) > 0.5).astype(jnp.float32)
    r4 = precision(x4, t4)
    jax.block_until_ready(r4)
    assert jnp.allclose(r4, _ref_precision(x4, t4), rtol=1e-5, atol=1e-6), (r4,)

    print("KERNEL_OK")
</pallas_src>

<mosaic_0001>
module attributes {stable_mosaic.version = 11 : i64} {
  func.func @_precision_kernel(%arg0: i32, %arg1: i32, %arg2: memref<16x128xf32, #tpu.memory_space<vmem>>, %arg3: memref<16x128xf32, #tpu.memory_space<vmem>>, %arg4: memref<1x8x128xf32, #tpu.memory_space<vmem>>, %arg5: memref<1x8x128xf32, #tpu.memory_space<vmem>>) attributes {dimension_semantics = [#tpu.dimension_semantics<parallel>, #tpu.dimension_semantics<arbitrary>], iteration_bounds = array<i64: 1, 1>, scalar_prefetch = 0 : i64, scratch_operands = 0 : i64, tpu.core_type = #tpu.core_type<tc>, window_params = [{transform_indices = @transform_0, window_bounds = array<i64: 16, 128>}, {transform_indices = @transform_1, window_bounds = array<i64: 16, 128>}, {transform_indices = @transform_2, window_bounds = array<i64: 1, 8, 128>}, {transform_indices = @transform_3, window_bounds = array<i64: 1, 8, 128>}]} {
    %c0_i32 = arith.constant 0 : i32
    %0 = arith.cmpi eq, %arg1, %c0_i32 : i32
    %1 = arith.extui %0 : i1 to i32
    %c0_i32_0 = arith.constant 0 : i32
    %2 = arith.cmpi ne, %1, %c0_i32_0 : i32
    scf.if %2 {
      %cst_17 = arith.constant 0.000000e+00 : f32
      %22 = vector.broadcast %cst_17 : f32 to vector<8x128xf32>
      %c0_18 = arith.constant 0 : index
      %c0_19 = arith.constant 0 : index
      %c0_20 = arith.constant 0 : index
      %23 = vector.load %arg4[%c0_18, %c0_19, %c0_20] : memref<1x8x128xf32, #tpu.memory_space<vmem>>, vector<1x8x128xf32>
      %24 = vector.shape_cast %23 : vector<1x8x128xf32> to vector<8x128xf32>
      %25 = vector.shape_cast %22 : vector<8x128xf32> to vector<1x8x128xf32>
      tpu.vector_store %arg4[%c0_18, %c0_19, %c0_20], %25 {strides = array<i32>} : memref<1x8x128xf32, #tpu.memory_space<vmem>>, vector<1x8x128xf32>,
      %cst_21 = arith.constant 0.000000e+00 : f32
      %26 = vector.broadcast %cst_21 : f32 to vector<8x128xf32>
      %c0_22 = arith.constant 0 : index
      %c0_23 = arith.constant 0 : index
      %c0_24 = arith.constant 0 : index
      %27 = vector.load %arg5[%c0_22, %c0_23, %c0_24] : memref<1x8x128xf32, #tpu.memory_space<vmem>>, vector<1x8x128xf32>
      %28 = vector.shape_cast %27 : vector<1x8x128xf32> to vector<8x128xf32>
      %29 = vector.shape_cast %26 : vector<8x128xf32> to vector<1x8x128xf32>
      tpu.vector_store %arg5[%c0_22, %c0_23, %c0_24], %29 {strides = array<i32>} : memref<1x8x128xf32, #tpu.memory_space<vmem>>, vector<1x8x128xf32>,
    } else {
    }
    %c0 = arith.constant 0 : index
    %c0_1 = arith.constant 0 : index
    %3 = vector.load %arg2[%c0, %c0_1] : memref<16x128xf32, #tpu.memory_space<vmem>>, vector<16x128xf32>
    %c0_2 = arith.constant 0 : index
    %c0_3 = arith.constant 0 : index
    %4 = vector.load %arg3[%c0_2, %c0_3] : memref<16x128xf32, #tpu.memory_space<vmem>>, vector<16x128xf32>
    %5 = arith.mulf %3, %4 : vector<16x128xf32>
    %c0_4 = arith.constant 0 : index
    %c0_5 = arith.constant 0 : index
    %c0_6 = arith.constant 0 : index
    %6 = vector.load %arg4[%c0_4, %c0_5, %c0_6] : memref<1x8x128xf32, #tpu.memory_space<vmem>>, vector<1x8x128xf32>
    %7 = vector.shape_cast %6 : vector<1x8x128xf32> to vector<8x128xf32>
    %8 = vector.shape_cast %5 : vector<16x128xf32> to vector<2x8x128xf32>
    %cst = arith.constant dense<0.000000e+00> : vector<8x128xf32>
    %9 = vector.multi_reduction <add>, %8, %cst [0] : vector<2x8x128xf32> to vector<8x128xf32>
    %10 = arith.addf %7, %9 : vector<8x128xf32>
    %c0_7 = arith.constant 0 : index
    %c0_8 = arith.constant 0 : index
    %c0_9 = arith.constant 0 : index
    %11 = vector.load %arg4[%c0_7, %c0_8, %c0_9] : memref<1x8x128xf32, #tpu.memory_space<vmem>>, vector<1x8x128xf32>
    %12 = vector.shape_cast %11 : vector<1x8x128xf32> to vector<8x128xf32>
    %13 = vector.shape_cast %10 : vector<8x128xf32> to vector<1x8x128xf32>
    tpu.vector_store %arg4[%c0_7, %c0_8, %c0_9], %13 {strides = array<i32>} : memref<1x8x128xf32, #tpu.memory_space<vmem>>, vector<1x8x128xf32>,
    %c0_10 = arith.constant 0 : index
    %c0_11 = arith.constant 0 : index
    %c0_12 = arith.constant 0 : index
    %14 = vector.load %arg5[%c0_10, %c0_11, %c0_12] : memref<1x8x128xf32, #tpu.memory_space<vmem>>, vector<1x8x128xf32>
    %15 = vector.shape_cast %14 : vector<1x8x128xf32> to vector<8x128xf32>
    %16 = vector.shape_cast %3 : vector<16x128xf32> to vector<2x8x128xf32>
    %cst_13 = arith.constant dense<0.000000e+00> : vector<8x128xf32>
    %17 = vector.multi_reduction <add>, %16, %cst_13 [0] : vector<2x8x128xf32> to vector<8x128xf32>
    %18 = arith.addf %15, %17 : vector<8x128xf32>
    %c0_14 = arith.constant 0 : index
    %c0_15 = arith.constant 0 : index
    %c0_16 = arith.constant 0 : index
    %19 = vector.load %arg5[%c0_14, %c0_15, %c0_16] : memref<1x8x128xf32, #tpu.memory_space<vmem>>, vector<1x8x128xf32>
    %20 = vector.shape_cast %19 : vector<1x8x128xf32> to vector<8x128xf32>
    %21 = vector.shape_cast %18 : vector<8x128xf32> to vector<1x8x128xf32>
    tpu.vector_store %arg5[%c0_14, %c0_15, %c0_16], %21 {strides = array<i32>} : memref<1x8x128xf32, #tpu.memory_space<vmem>>, vector<1x8x128xf32>,
    return
  }
  func.func @transform_0(%arg0: i32, %arg1: i32) -> (i32, i32) {
    %c1_i32 = arith.constant 1 : i32
    %0 = arith.muli %arg0, %c1_i32 : i32
    %1 = arith.addi %0, %arg1 : i32
    %c0_i32 = arith.constant 0 : i32
    %2 = arith.minsi %1, %c0_i32 : i32
    %c0_i32_0 = arith.constant 0 : i32
    %c0_i32_1 = arith.constant 0 : i32
    return %2, %c0_i32_0 : i32, i32
  }
  func.func @transform_1(%arg0: i32, %arg1: i32) -> (i32, i32) {
    %c1_i32 = arith.constant 1 : i32
    %0 = arith.muli %arg0, %c1_i32 : i32
    %1 = arith.addi %0, %arg1 : i32
    %c0_i32 = arith.constant 0 : i32
    %2 = arith.minsi %1, %c0_i32 : i32
    %c0_i32_0 = arith.constant 0 : i32
    %c0_i32_1 = arith.constant 0 : i32
    return %2, %c0_i32_0 : i32, i32
  }
  func.func @transform_2(%arg0: i32, %arg1: i32) -> (i32, i32, i32) {
    %c0_i32 = arith.constant 0 : i32
    %c0_i32_0 = arith.constant 0 : i32
    %c0_i32_1 = arith.constant 0 : i32
    return %arg0, %c0_i32, %c0_i32_0 : i32, i32, i32
  }
  func.func @transform_3(%arg0: i32, %arg1: i32) -> (i32, i32, i32) {
    %c0_i32 = arith.constant 0 : i32
    %c0_i32_0 = arith.constant 0 : i32
    %c0_i32_1 = arith.constant 0 : i32
    return %arg0, %c0_i32, %c0_i32_0 : i32, i32, i32
  }
}

</mosaic_0001>

<llo_original>
// kernel: tpu_custom_call.1
$region0: #{tpu_custom_call.1}
  #allocation0 [shape = 'u32[]', space=smem, size = 0x4, offset = 0x4, fixed_abs, tag = 'smem constant byte address 0x4 - core index']
  #allocation1 [shape = 'u32[144,128]{1,0:T(1,128)}', space=vmem, size = 0x12000, scoped, tag = 'internal scratch']
  %s0 = inlined_call_operand.hbm [shape: f32[16,128], index: 0, kind: input, shape index: {}]
  %s1 = inlined_call_operand.hbm [shape: f32[16,128], index: 1, kind: input, shape index: {}]
  %s2 = inlined_call_operand.hbm [shape: f32[1,8,128], index: 2, kind: output, shape index: {0}]
  %s3 = inlined_call_operand.hbm [shape: f32[1,8,128], index: 3, kind: output, shape index: {1}]
  %4 = xla_tuple %s2, %s3
  %s5 = sld [smem:[#allocation0]]
  $region38: #{tpu_custom_call.1} parent=0
    _
  %s7 = ssub.s32 1, %s5
  %s8 = scalar_select 0, %s7, %s5
  $region1: #{tpu_custom_call.1} parent=0
    #allocation2 [shape = 'u8[8192]{0}', space=vmem, size = 0x2000, scoped, tag = 'input window, operand 0, single buffered']
    #allocation3 [shape = 's32[1]{0}', space=sflag, size = 0x4, scoped, tag = 'scoped memory for tpu_custom_call.1']
    #allocation4 [shape = 's32[1]{0}', space=sflag, size = 0x4, scoped, tag = 'scoped memory for tpu_custom_call.1']
    #allocation5 [shape = 'u8[8192]{0}', space=vmem, size = 0x2000, scoped, tag = 'input window, operand 1, single buffered']
    #allocation6 [shape = 's32[1]{0}', space=sflag, size = 0x4, scoped, tag = 'scoped memory for tpu_custom_call.1']
    #allocation7 [shape = 'u8[4096]{0}', space=vmem, size = 0x1000, scoped, tag = 'output window, operand 0, single buffered']
    #allocation8 [shape = 'u8[4096]{0}', space=vmem, size = 0x1000, scoped, tag = 'output window, operand 1, single buffered']
    #allocation9 [shape = 's32[1]{0}', space=sflag, size = 0x4, scoped, tag = 'scoped memory for tpu_custom_call.1']
    %9 = vsyncpa [#allocation3], 0
    %10 = vsyncpa [#allocation6], 0
    %11 = vsyncpa [#allocation4], 0
    %12 = vsyncpa [#allocation9], 0
    // Predicated region
    $region2: #{tpu_custom_call.1} parent=1 // pred_check
      _
    $region3: #{tpu_custom_call.1} parent=1 // pred_check_branch
      %14 = sbr.rel (0) target = $region5
    $region4: #{tpu_custom_call.1} parent=1 // pred_region
      %s15 = sadd.s32 0, 0
      %p16 = scmp.lt.s32.totalorder %s15, 0
      %s17 = scalar_select %p16, %s15, 0
      %s18 = smul.u32 2, %s17
      %s20 = ssub.s32 256, 256
      %21 = vsyncadd [#allocation3], %s20
      %s22 = smul.addr %s18, 128
      %s23 = scalar_lea.hbm %s0, %s22
      %s24 = sshll.u32 [#allocation2], 4
      %s25 = int_to_ptr.vmem [resolvable:$true] %s24
      %30 = dma.hbm_to_vmem [thread:$0]  %s23, 256, %s25, [#allocation3], 128, 128, 8
    $region5: #{tpu_custom_call.1} parent=1 // pred_fallthru
      _
    // Predicated region
    $region6: #{tpu_custom_call.1} parent=1 // pred_check
      _
    $region7: #{tpu_custom_call.1} parent=1 // pred_check_branch
      %32 = sbr.rel (0) target = $region9
    $region8: #{tpu_custom_call.1} parent=1 // pred_region
      %s33 = sadd.s32 0, 0
      %p34 = scmp.lt.s32.totalorder %s33, 0
      %s35 = scalar_select %p34, %s33, 0
      %s36 = smul.u32 2, %s35
      %s38 = ssub.s32 256, 256
      %39 = vsyncadd [#allocation6], %s38
      %s40 = smul.addr %s36, 128
      %s41 = scalar_lea.hbm %s1, %s40
      %s42 = sshll.u32 [#allocation5], 4
      %s43 = int_to_ptr.vmem [resolvable:$true] %s42
      %48 = dma.hbm_to_vmem [thread:$0]  %s41, 256, %s43, [#allocation6], 128, 128, 8
    $region9: #{tpu_custom_call.1} parent=1 // pred_fallthru
      _
    // Predicated region
    $region10: #{tpu_custom_call.1} parent=1 // pred_check
      _
    $region11: #{tpu_custom_call.1} parent=1 // pred_check_branch
      %50 = sbr.rel (0) target = $region13
    $region12: #{tpu_custom_call.1} parent=1 // pred_region
      %51 = dma.done [#allocation3], 256
    $region13: #{tpu_custom_call.1} parent=1 // pred_fallthru
      _
    // Predicated region
    $region14: #{tpu_custom_call.1} parent=1 // pred_check
      _
    $region15: #{tpu_custom_call.1} parent=1 // pred_check_branch
      %53 = sbr.rel (0) target = $region17
    $region16: #{tpu_custom_call.1} parent=1 // pred_region
      %54 = dma.done [#allocation6], 256
    $region17: #{tpu_custom_call.1} parent=1 // pred_fallthru
      _
    %s55 = sadd.s32 0, 0
    %p56 = scmp.lt.s32.totalorder %s55, 0
    %s57 = scalar_select %p56, %s55, 0
    %s58 = smul.u32 2, %s57
    %s59 = sadd.s32 0, 0
    %p60 = scmp.lt.s32.totalorder %s59, 0
    %s61 = scalar_select %p60, %s59, 0
    %s62 = smul.u32 2, %s61
    %p63 = scmp.eq.s32.totalorder 0, 0
    // Predicated region
    $region18: #{tpu_custom_call.1} parent=1 // pred_check
      %p64 = pneg %p63
    $region19: #{tpu_custom_call.1} parent=1 // pred_check_branch
      %66 = sbr.rel (%p64) target = $region21
    $region20: #{tpu_custom_call.1} parent=1 // pred_region
      %67 = vst [vmem:[#allocation7] sm:$0xff] 0.0
      %68 = vst [vmem:[#allocation8] sm:$0xff] 0.0
    $region21: #{tpu_custom_call.1} parent=1 // pred_fallthru
      _
    %v69 = vld [vmem:[#allocation2] sm:$0xff]
    %v70 = vld [vmem:[#allocation2 + $0x8] sm:$0xff]
    %v71 = vld [vmem:[#allocation5] sm:$0xff]
    %v72 = vld [vmem:[#allocation5 + $0x8] sm:$0xff]
    %v73 = vmul.f32 %v69, %v71
    %v74 = vmul.f32 %v70, %v72
    %v75 = vld [vmem:[#allocation7] sm:$0xff]
    %v76 = vadd.f32 %v73, %v74
    %v77 = vadd.f32 %v75, %v76
    %78 = vst [vmem:[#allocation7] sm:$0xff] %v77
    %v79 = vld [vmem:[#allocation8] sm:$0xff]
    %v80 = vadd.f32 %v69, %v70
    %v81 = vadd.f32 %v79, %v80
    %82 = vst [vmem:[#allocation8] sm:$0xff] %v81
    // Predicated region
    $region22: #{tpu_custom_call.1} parent=1 // pred_check
      _
    $region23: #{tpu_custom_call.1} parent=1 // pred_check_branch
      %84 = sbr.rel (0) target = $region25
    $region24: #{tpu_custom_call.1} parent=1 // pred_region
      %s86 = ssub.s32 128, 128
      %87 = vsyncadd [#allocation4], %s86
      %s89 = sshll.u32 [#allocation7], 4
      %s90 = int_to_ptr.vmem [resolvable:$true] %s89
      %92 = dma.vmem_to_hbm [thread:$0]  %s90, 128, %s2, [#allocation4]
    $region25: #{tpu_custom_call.1} parent=1 // pred_fallthru
      _
    // Predicated region
    $region26: #{tpu_custom_call.1} parent=1 // pred_check
      _
    $region27: #{tpu_custom_call.1} parent=1 // pred_check_branch
      %94 = sbr.rel (0) target = $region29
    $region28: #{tpu_custom_call.1} parent=1 // pred_region
      %s96 = ssub.s32 128, 128
      %97 = vsyncadd [#allocation9], %s96
      %s99 = sshll.u32 [#allocation8], 4
      %s100 = int_to_ptr.vmem [resolvable:$true] %s99
      %102 = dma.vmem_to_hbm [thread:$0]  %s100, 128, %s3, [#allocation9]
    $region29: #{tpu_custom_call.1} parent=1 // pred_fallthru
      _
    // Predicated region
    $region30: #{tpu_custom_call.1} parent=1 // pred_check
      _
    $region31: #{tpu_custom_call.1} parent=1 // pred_check_branch
      %104 = sbr.rel (0) target = $region33
    $region32: #{tpu_custom_call.1} parent=1 // pred_region
      %105 = dma.done [#allocation4], 128
    $region33: #{tpu_custom_call.1} parent=1 // pred_fallthru
      _
    // Predicated region
    $region34: #{tpu_custom_call.1} parent=1 // pred_check
      _
    $region35: #{tpu_custom_call.1} parent=1 // pred_check_branch
      %107 = sbr.rel (0) target = $region37
    $region36: #{tpu_custom_call.1} parent=1 // pred_region
      %108 = dma.done [#allocation9], 128
    $region37: #{tpu_custom_call.1} parent=1 // pred_fallthru
      _
    %109 = vsyncpa [#allocation3], 1
    %110 = vsyncpa [#allocation6], 1
    %111 = vsyncpa [#allocation4], 1
    %112 = vsyncpa [#allocation9], 1

</llo_original>
